<compile_context>
chip_gen: v7x
topology: tpu7x:2x2x1
jax: 0.10.0
libtpu: 0.0.40
codegen_flags: <defaults>
</compile_context>

<pallas_src>
import math
import functools

import numpy as np
import jax
import jax.numpy as jnp
from jax.experimental import pallas as pl
from jax.experimental.pallas import tpu as pltpu


# ------------------------------------------------------------------ pe buffer

def build_pe(max_seq_len: int, d_model: int) -> jnp.ndarray:
    """Positional-encoding buffer, numerically identical to the PyTorch init."""
    assert d_model % 2 == 0, "PositionalEncoder requires an even d_model"
    pos = np.arange(max_seq_len, dtype=np.float64)[:, None]          # (S, 1)
    i_even = np.arange(0, d_model, 2, dtype=np.float64)[None, :]     # (1, D/2)
    pe = np.zeros((max_seq_len, d_model), dtype=np.float32)
    # NOTE: intentionally matches the module's non-standard exponents:
    #   sin column i uses exponent 2*i/d_model, cos column i+1 uses 2*(i+1)/d_model.
    pe[:, 0::2] = np.sin(pos / np.power(10000.0, (2.0 * i_even) / d_model))
    pe[:, 1::2] = np.cos(pos / np.power(10000.0, (2.0 * (i_even + 1.0)) / d_model))
    return jnp.asarray(pe)  # (max_seq_len, d_model) float32


def prepare_pe(pe_full: jnp.ndarray, seq_len: int) -> jnp.ndarray:
    """Slice + flatten pe once per (seq_len, d_model).

    Do this OUTSIDE the per-step forward path: the slice is a separate XLA
    copy op and should not be re-issued on every call.
    """
    assert pe_full.shape[0] >= seq_len, "seq_len exceeds max_seq_len of pe"
    d_model = pe_full.shape[-1]
    return pe_full[:seq_len, :].reshape(1, seq_len * d_model)


# ------------------------------------------------------------------ tiling

_BLOCK_BYTES = 4 * 1024 * 1024       # ~4 MiB blocks (v7x-friendly, fits v5e
                                     # with the explicit vmem_limit below)
_VMEM_LIMIT_BYTES = 48 * 1024 * 1024 # 2x(in)+2x(out) 4 MiB blocks + pe << 48 MiB


def _round_up(x: int, m: int) -> int:
    return ((x + m - 1) // m) * m


def _pick_tile(dim: int, align: int, max_tile: int) -> int:
    """Largest multiple of `align` that divides `dim` and is <= max_tile.

    `dim` must either be <= max_tile (full-dim block, always legal) or a
    multiple of `align` (guaranteed by wrapper-side padding), so a legal tile
    always exists.
    """
    if dim <= max_tile:
        return dim
    t = (max_tile // align) * align
    while t >= align:
        if dim % t == 0:
            return t
        t -= align
    return align  # unreachable when align | dim


def _pos_enc_kernel(x_ref, pe_ref, o_ref, *, scale):
    # x_ref: (tB, tC)   flattened (batch rows, seq*dim lanes)
    # pe_ref: (1, tC)   batch-independent positional encodings (sublane bcast)
    # o_ref: (tB, tC)
    o_ref[...] = (x_ref[...] * scale + pe_ref[...]).astype(o_ref.dtype)


def positional_encoder(x: jnp.ndarray,
                       pe_flat: jnp.ndarray,
                       d_model: int,
                       *,
                       alias_input: bool = False) -> jnp.ndarray:
    """x: (B, S, D); pe_flat: flattened pe for this seq_len, size S*D
    (from prepare_pe). Returns (B, S, D)."""
    B, S, D = x.shape
    assert D == d_model
    C = S * D
    assert pe_flat.size == C, "pe_flat must be prepare_pe(pe_full, seq_len)"
    scale = float(math.sqrt(d_model))

    itemsize = jnp.dtype(x.dtype).itemsize
    # dtype-aware sublane alignment: 8 (f32) / 16 (bf16,f16) / 32 (int8,fp8).
    row_align = max(8, 32 // itemsize)

    # Lane-dense 2D views (reshape of x is a free view; pe is pre-flattened).
    x2 = x.reshape(B, C)
    pe2 = pe_flat.reshape(1, C)

    # --- column tile: multiple of 128 lanes, byte-budgeted -------------------
    max_tc = max(128, ((_BLOCK_BYTES // (row_align * itemsize)) // 128) * 128)
    C_pad = C if (C <= max_tc or C % 128 == 0) else _round_up(C, 128)
    tC = _pick_tile(C_pad, 128, max_tc)

    # --- row (batch) tile: multiple of row_align, byte-budgeted --------------
    max_tb = max(row_align,
                 ((_BLOCK_BYTES // (tC * itemsize)) // row_align) * row_align)
    B_pad = B if (B <= max_tb or B % row_align == 0) else _round_up(B, row_align)
    tB = _pick_tile(B_pad, row_align, max_tb)

    # --- never collapse a non-trivial problem to a single grid step ----------
    # (v7x has 2 TensorCores; a 1-step grid serializes onto one TC and removes
    #  all pipelining.  Best-effort: split the column axis, else the row axis.)
    if (C_pad // tC) * (B_pad // tB) == 1 and B_pad * C_pad * itemsize > 2 * 1024 * 1024:
        if tC % 256 == 0:
            tC //= 2
        elif tB % (2 * row_align) == 0:
            tB //= 2

    # --- pad awkward shapes instead of emitting one giant / masked block -----
    pad_b, pad_c = B_pad - B, C_pad - C
    if pad_b or pad_c:
        x2 = jnp.pad(x2, ((0, pad_b), (0, pad_c)))
        if pad_c:
            pe2 = jnp.pad(pe2, ((0, 0), (0, pad_c)))

    grid = (C_pad // tC, B_pad // tB)  # columns outer, batch innermost

    kernel = functools.partial(_pos_enc_kernel, scale=scale)

    pe_bytes = C_pad * jnp.dtype(pe2.dtype).itemsize
    cost = pl.CostEstimate(
        flops=2 * B_pad * C_pad,
        transcendentals=0,
        bytes_accessed=2 * B_pad * C_pad * itemsize + pe_bytes,
    )

    out2 = pl.pallas_call(
        kernel,
        out_shape=jax.ShapeDtypeStruct((B_pad, C_pad), x.dtype),
        grid_spec=pltpu.PrefetchScalarGridSpec(
            num_scalar_prefetch=0,
            grid=grid,
            in_specs=[
                # x: depends on both grid axes.
                pl.BlockSpec((tB, tC), lambda c, r: (r, c)),
                # pe: depends on the column tile only -> the resident block is
                # reused across the innermost batch axis (no re-DMA).
                pl.BlockSpec((1, tC), lambda c, r: (0, c)),
            ],
            out_specs=pl.BlockSpec((tB, tC), lambda c, r: (r, c)),
        ),
        compiler_params=pltpu.CompilerParams(
            dimension_semantics=("parallel", "parallel"),
            vmem_limit_bytes=_VMEM_LIMIT_BYTES,
        ),
        cost_estimate=cost,
        # Optional: write over x when it is dead after this op (saves an HBM
        # output allocation in the full model).  Only valid when no padding
        # was introduced.
        input_output_aliases=({0: 0} if (alias_input and not (pad_b or pad_c))
                              else {}),
    )(x2, pe2)

    if pad_b or pad_c:
        out2 = out2[:B, :C]
    return out2.reshape(B, S, D)


# ------------------------------------------------------------------ self-test

if __name__ == "__main__":
    key = jax.random.PRNGKey(0)

    # --- small shape, matches the module's defaults --------------------------
    d_model = 32
    max_seq_len = 80
    batch = 2
    seq_len = 8

    x = jax.random.normal(key, (batch, seq_len, d_model), dtype=jnp.float32)
    pe_full = build_pe(max_seq_len, d_model)
    pe_flat = prepare_pe(pe_full, seq_len)   # hoisted out of the forward path

    out = positional_encoder(x, pe_flat, d_model)
    out = jax.block_until_ready(out)

    ref = x * math.sqrt(d_model) + pe_full[None, :seq_len, :]
    np.testing.assert_allclose(np.asarray(out), np.asarray(ref),
                               rtol=1e-6, atol=1e-6)

    # --- medium shape: exercises the multi-step / forced-split tiling path ---
    d_model2, seq_len2, batch2 = 512, 256, 8
    key2 = jax.random.PRNGKey(1)
    x2 = jax.random.normal(key2, (batch2, seq_len2, d_model2), dtype=jnp.float32)
    pe_full2 = build_pe(seq_len2, d_model2)
    pe_flat2 = prepare_pe(pe_full2, seq_len2)

    out2 = jax.block_until_ready(positional_encoder(x2, pe_flat2, d_model2))
    ref2 = x2 * math.sqrt(d_model2) + pe_full2[None, :seq_len2, :]
    np.testing.assert_allclose(np.asarray(out2), np.asarray(ref2),
                               rtol=1e-5, atol=1e-5)

    print("KERNEL_OK")
</pallas_src>

<mosaic_0001>
module attributes {stable_mosaic.version = 11 : i64} {
  func.func @_pos_enc_kernel(%arg0: i32, %arg1: i32, %arg2: memref<2x256xf32, #tpu.memory_space<vmem>>, %arg3: memref<1x256xf32, #tpu.memory_space<vmem>>, %arg4: memref<2x256xf32, #tpu.memory_space<vmem>>) attributes {dimension_semantics = [#tpu.dimension_semantics<parallel>, #tpu.dimension_semantics<parallel>], iteration_bounds = array<i64: 1, 1>, scalar_prefetch = 0 : i64, scratch_operands = 0 : i64, tpu.core_type = #tpu.core_type<tc>, window_params = [{transform_indices = @transform_0, window_bounds = array<i64: 2, 256>}, {transform_indices = @transform_1, window_bounds = array<i64: 1, 256>}, {transform_indices = @transform_2, window_bounds = array<i64: 2, 256>}]} {
    %c0 = arith.constant 0 : index
    %c0_0 = arith.constant 0 : index
    %0 = vector.load %arg2[%c0, %c0_0] : memref<2x256xf32, #tpu.memory_space<vmem>>, vector<2x256xf32>
    %cst = arith.constant 5.65685415 : f32
    %1 = vector.broadcast %cst : f32 to vector<2x256xf32>
    %2 = arith.mulf %0, %1 : vector<2x256xf32>
    %c0_1 = arith.constant 0 : index
    %c0_2 = arith.constant 0 : index
    %3 = vector.load %arg3[%c0_1, %c0_2] : memref<1x256xf32, #tpu.memory_space<vmem>>, vector<1x256xf32>
    %4 = vector.broadcast %3 : vector<1x256xf32> to vector<2x256xf32>
    %5 = arith.addf %2, %4 : vector<2x256xf32>
    %c0_3 = arith.constant 0 : index
    %c0_4 = arith.constant 0 : index
    %6 = vector.load %arg4[%c0_3, %c0_4] : memref<2x256xf32, #tpu.memory_space<vmem>>, vector<2x256xf32>
    tpu.vector_store %arg4[%c0_3, %c0_4], %5 {strides = array<i32>} : memref<2x256xf32, #tpu.memory_space<vmem>>, vector<2x256xf32>,
    return
  }
  func.func @transform_0(%arg0: i32, %arg1: i32) -> (i32, i32) {
    %c0_i32 = arith.constant 0 : i32
    return %arg1, %arg0 : i32, i32
  }
  func.func @transform_1(%arg0: i32, %arg1: i32) -> (i32, i32) {
    %c0_i32 = arith.constant 0 : i32
    %c0_i32_0 = arith.constant 0 : i32
    return %c0_i32, %arg0 : i32, i32
  }
  func.func @transform_2(%arg0: i32, %arg1: i32) -> (i32, i32) {
    %c0_i32 = arith.constant 0 : i32
    return %arg1, %arg0 : i32, i32
  }
}

</mosaic_0001>

<llo_original>
// kernel: tpu_custom_call.1
$region0: #{tpu_custom_call.1}
  #allocation0 [shape = 'u32[]', space=smem, size = 0x4, offset = 0x4, fixed_abs, tag = 'smem constant byte address 0x4 - core index']
  #allocation1 [shape = 'u32[144,128]{1,0:T(1,128)}', space=vmem, size = 0x12000, scoped, tag = 'internal scratch']
  %s0 = inlined_call_operand.hbm [shape: f32[2,256], index: 0, kind: input, shape index: {}]
  %s1 = inlined_call_operand.vmem [shape: f32[1,256], index: 1, kind: input, shape index: {}]
  %s2 = inlined_call_operand.hbm [shape: f32[2,256], index: 2, kind: output, shape index: {}]
  %s3 = sld [smem:[#allocation0]]
  $region22: #{tpu_custom_call.1} parent=0
    _
  %s5 = ssub.s32 1, %s3
  %s6 = scalar_select 0, %s5, %s3
  $region1: #{tpu_custom_call.1} parent=0
    #allocation2 [shape = 'u8[2048]{0}', space=vmem, size = 0x800, scoped, tag = 'input window, operand 0, single buffered']
    #allocation3 [shape = 's32[1]{0}', space=sflag, size = 0x4, scoped, tag = 'scoped memory for tpu_custom_call.1']
    #allocation4 [shape = 's32[1]{0}', space=sflag, size = 0x4, scoped, tag = 'scoped memory for tpu_custom_call.1']
    #allocation5 [shape = 'u8[2048]{0}', space=vmem, size = 0x800, scoped, tag = 'output window, operand 0, single buffered']
    %7 = vsyncpa [#allocation3], 0
    %8 = vsyncpa [#allocation4], 0
    // Predicated region
    $region2: #{tpu_custom_call.1} parent=1 // pred_check
      _
    $region3: #{tpu_custom_call.1} parent=1 // pred_check_branch
      %10 = sbr.rel (0) target = $region5
    $region4: #{tpu_custom_call.1} parent=1 // pred_region
      %s12 = ssub.s32 64, 64
      %13 = vsyncadd [#allocation3], %s12
      %s15 = sshll.u32 [#allocation2], 4
      %s16 = int_to_ptr.vmem [resolvable:$true] %s15
      %18 = dma.hbm_to_vmem [thread:$0]  %s0, 64, %s16, [#allocation3]
    $region5: #{tpu_custom_call.1} parent=1 // pred_fallthru
      _
    // Predicated region
    $region6: #{tpu_custom_call.1} parent=1 // pred_check
      _
    $region7: #{tpu_custom_call.1} parent=1 // pred_check_branch
      %20 = sbr.rel (0) target = $region9
    $region8: #{tpu_custom_call.1} parent=1 // pred_region
      _
    $region9: #{tpu_custom_call.1} parent=1 // pred_fallthru
      _
    // Predicated region
    $region10: #{tpu_custom_call.1} parent=1 // pred_check
      _
    $region11: #{tpu_custom_call.1} parent=1 // pred_check_branch
      %22 = sbr.rel (0) target = $region13
    $region12: #{tpu_custom_call.1} parent=1 // pred_region
      %23 = dma.done [#allocation3], 64
    $region13: #{tpu_custom_call.1} parent=1 // pred_fallthru
      _
    %v24 = vld [vmem:[#allocation2] sm:$0xf]
    %v25 = vmul.f32 %v24, 5.656854
    %v26 = vld [vmem:[%s1] sm:$0x3]
    %v28 = vlaneseq
    %v29 = vshrl.u32 %v28, 7
    %v30 = vsub.s32 0, %v29
    %v31 = vrot.slane %v26, %v30
    %v32 = vlaneseq
    %v33 = vshrl.u32 %v32, 7
    %v34 = vsub.s32 1, %v33
    %v35 = vrot.slane %v26, %v34
    %v36 = vcombine.low %v31, %v35
    %v38 = vunpack.c.l.s4 1983009808
    %v39 = vunpack.c.0.s8 %v38
    %v40 = vlaneseq
    %v41 = vshrl.u32 %v40, 7
    %v42 = vsub.s32 %v39, %v41
    %v43 = vrot.slane %v36, %v42
    %v45 = vadd.f32 %v25, %v43
    %46 = vst [vmem:[#allocation5] sm:$0xf] %v45
    // Predicated region
    $region14: #{tpu_custom_call.1} parent=1 // pred_check
      _
    $region15: #{tpu_custom_call.1} parent=1 // pred_check_branch
      %48 = sbr.rel (0) target = $region17
    $region16: #{tpu_custom_call.1} parent=1 // pred_region
      %s50 = ssub.s32 64, 64
      %51 = vsyncadd [#allocation4], %s50
      %s53 = sshll.u32 [#allocation5], 4
      %s54 = int_to_ptr.vmem [resolvable:$true] %s53
      %56 = dma.vmem_to_hbm [thread:$0]  %s54, 64, %s2, [#allocation4]
    $region17: #{tpu_custom_call.1} parent=1 // pred_fallthru
      _
    // Predicated region
    $region18: #{tpu_custom_call.1} parent=1 // pred_check
      _
    $region19: #{tpu_custom_call.1} parent=1 // pred_check_branch
      %58 = sbr.rel (0) target = $region21
    $region20: #{tpu_custom_call.1} parent=1 // pred_region
      %59 = dma.done [#allocation4], 64
    $region21: #{tpu_custom_call.1} parent=1 // pred_fallthru
      _
    %60 = vsyncpa [#allocation3], 1
    %61 = vsyncpa [#allocation4], 1

</llo_original>
